<compile_context>
chip_gen: v7x
topology: tpu7x:2x2x1
jax: 0.10.0
libtpu: 0.0.40
codegen_flags: <defaults>
</compile_context>

<pallas_src>
import functools
import math

import jax
import jax.numpy as jnp
from jax.experimental import pallas as pl
from jax.experimental.pallas import tpu as pltpu


def _rpl_kernel(x_ref, gt_ref, ent_ref, thresh_ref, emb_ref, out_ref, *,
                cos_m, sin_m, th, mm, scale, margin, easy_margin, hw, tile_hw):
    j = pl.program_id(1)                          # pixel-tile index (reduction axis, last)

    x = x_ref[...].astype(jnp.float32)            # (C, TN)
    gt = gt_ref[...]                              # (1, TN) int32
    ent = ent_ref[...]                            # (1, TN) f32
    emb_s = emb_ref[...]                          # (K, C) f32 = scale * l2norm(prototypes)
    k = emb_s.shape[0]

    # F.normalize(x, dim=channel) folded into the matmul output:
    #   scale*cosine = (scale*emb_l2 @ x) * rsqrt(max(||x||^2, 1e-24))
    sumsq = jnp.sum(x * x, axis=0, keepdims=True)                # (1, TN)
    inv_norm = jax.lax.rsqrt(jnp.maximum(sumsq, 1e-24))          # (1, TN)

    d = jnp.dot(emb_s, x, preferred_element_type=jnp.float32)    # (K, TN) on the MXU
    logits = d * inv_norm                                        # (K, TN) = scale * cosine

    # one-hot over the class (sublane) axis from a tiny (K, 1) iota
    k_iota = jax.lax.broadcasted_iota(jnp.int32, (k, 1), 0)      # (K, 1)
    is_target = k_iota == gt                                     # (K, TN) bool
    # NOTE: out-of-range labels (e.g. an ignore index) give an all-False is_target;
    # like the reference, such pixels still contribute exp(0)=1 as the "positive" term.

    # target-row logit (scaled cosine of the gt class)
    logit_t = jnp.sum(jnp.where(is_target, logits, 0.0),
                      axis=0, keepdims=True)                     # (1, TN)

    if margin != 0.0:
        # ArcFace margin on the target row only: 1 sqrt / blend per pixel instead of K.
        cos_t = logit_t * (1.0 / scale)
        sin_t = jnp.sqrt(jnp.clip(1.0 - cos_t * cos_t, 0.0, 1.0))
        phi_t = cos_t * cos_m - sin_t * sin_m
        if easy_margin:
            phi_t = jnp.where(cos_t > 0.0, phi_t, cos_t)
        else:
            phi_t = jnp.where(cos_t > th, phi_t, cos_t - mm)
        pos_logit = scale * phi_t                                # (1, TN)
    else:
        pos_logit = logit_t

    positive = jnp.exp(pos_logit)                                # (1, TN)
    # Denominator: non-target rows keep exp(s*cos); the target row contributes exp(s*phi_t).
    # (NOT the sum - exp(s*cos_t) + exp(s*phi_t) form -> no catastrophic cancellation.)
    sum_rest = jnp.sum(jnp.where(is_target, 0.0, jnp.exp(logits)),
                       axis=0, keepdims=True)                    # (1, TN)
    sum_all = sum_rest + positive

    inv = pl.reciprocal(sum_all + 1e-7, approx=False)
    term = jnp.log(positive * inv + 1e-7)                        # (1, TN)

    # entropy-percentile mask computed in-kernel from the SMEM scalar threshold
    keep = ent <= thresh_ref[0, 0]
    if hw % tile_hw != 0:                                        # boundary-tile validity
        lane = jax.lax.broadcasted_iota(jnp.int32, keep.shape, 1)
        keep = jnp.logical_and(keep, j * tile_hw + lane < hw)
    term = jnp.where(keep, term, 0.0)

    @pl.when(j == 0)
    def _():
        out_ref[...] = jnp.zeros_like(out_ref)
    out_ref[...] = out_ref[...] + term                           # lane-dense accumulation


def _round_up(a, b):
    return (a + b - 1) // b * b


def _tile_config():
    """(max pixel tile, VMEM budget) per TPU generation."""
    try:
        kind = jax.devices()[0].device_kind.lower()
    except Exception:
        kind = ""
    if "v5" in kind or "v6" in kind:
        return 32768, 64 * 1024 * 1024        # 128 MiB VMEM per core
    # v7x (64 MiB VMEM per TensorCore) and unknown chips: conservative budget.
    return 16384, 48 * 1024 * 1024


def reliable_prototype_loss(x, gt, entropy, emb_weight, *, scale, margin, percent,
                            easy_margin=True, tile_hw=None, x_dtype=None):
    """Forward loss of ReliablePrototypeLoss (initted prototypes, use_feature=False).

    x: (B, C, H, W) float, gt: (B, 1, H, W) or (B, H, W) int, entropy: (B, H, W) float,
    emb_weight: (K, C). Set x_dtype=jnp.bfloat16 to halve the dominant HBM stream if
    the accuracy budget allows it (kernel upcasts to f32 in-register).
    """
    B, C, H, W = x.shape
    HW = H * W
    N = B * HW
    K = emb_weight.shape[0]

    if gt.ndim == 3:
        gt = gt[:, None]
    # TODO(synk): F.interpolate(mode='nearest') resize of gt to x's (H, W) omitted;
    # gt is assumed to already be at the feature resolution.

    # Free reshapes: keep NCHW's channels-in-sublane / pixels-in-lane layout.
    x3 = x.reshape(B, C, HW)
    x3 = x3.astype(x_dtype) if x_dtype is not None else x3.astype(jnp.float32)
    gt3 = gt.reshape(B, 1, HW).astype(jnp.int32)
    ent3 = entropy.reshape(B, 1, HW).astype(jnp.float32)

    # Entropy percentile threshold (linear interpolation == np.percentile default),
    # passed to the kernel as a single SMEM scalar; the <= mask is formed in-kernel.
    thresh = jnp.percentile(entropy.reshape(-1).astype(jnp.float32), percent)
    thresh = thresh.reshape(1, 1).astype(jnp.float32)

    # l2-normalize prototype rows once, with `scale` folded in (final matmul layout).
    ew = emb_weight.astype(jnp.float32)
    emb_l2 = ew * jax.lax.rsqrt(
        jnp.maximum(jnp.sum(ew * ew, axis=-1, keepdims=True), 1e-24))
    emb_s = emb_l2 * scale if scale != 1.0 else emb_l2

    cap, vmem_limit = _tile_config()
    if tile_hw is None:
        tile_hw = min(cap, _round_up(HW, 128))
    assert tile_hw % 128 == 0, "pixel tile must be lane-aligned (multiple of 128)"
    num_tiles = pl.cdiv(HW, tile_hw)
    grid = (B, num_tiles)
    # TODO(synk): for B == 1 on v7x, split the pixel axis into an extra "parallel"
    # grid axis so both TensorCores are used.

    kernel = functools.partial(
        _rpl_kernel,
        cos_m=math.cos(margin), sin_m=math.sin(margin),
        th=math.cos(math.pi - margin), mm=math.sin(math.pi - margin) * margin,
        scale=float(scale), margin=float(margin), easy_margin=bool(easy_margin),
        hw=HW, tile_hw=tile_hw)

    partial_sums = pl.pallas_call(
        kernel,
        out_shape=jax.ShapeDtypeStruct((B, 1, tile_hw), jnp.float32),
        grid_spec=pltpu.PrefetchScalarGridSpec(
            num_scalar_prefetch=0,
            grid=grid,
            in_specs=[
                pl.BlockSpec((None, C, tile_hw), lambda b, j: (b, 0, j)),   # features
                pl.BlockSpec((None, 1, tile_hw), lambda b, j: (b, 0, j)),   # labels
                pl.BlockSpec((None, 1, tile_hw), lambda b, j: (b, 0, j)),   # entropy
                pl.BlockSpec(memory_space=pltpu.MemorySpace.SMEM),          # threshold
                pl.BlockSpec((K, C), lambda b, j: (0, 0)),                  # prototypes
            ],
            out_specs=pl.BlockSpec((None, 1, tile_hw), lambda b, j: (b, 0, 0)),
        ),
        compiler_params=pltpu.CompilerParams(
            # batch axis parallel (both v7x TensorCores), pixel-tile reduction arbitrary
            dimension_semantics=("parallel", "arbitrary"),
            vmem_limit_bytes=vmem_limit),
    )(x3, gt3, ent3, thresh, emb_s)

    return -jnp.sum(partial_sums) / N


def _reference(x, gt, entropy, emb_weight, *, scale, margin, percent):
    """Pure-JAX reference mirroring the PyTorch forward (easy_margin=True)."""
    B, C, H, W = x.shape
    N = B * H * W
    fx = jnp.transpose(x, (0, 2, 3, 1)).reshape(N, C).astype(jnp.float32)
    fgt = jnp.transpose(gt, (0, 2, 3, 1)).reshape(N).astype(jnp.int32)
    K = emb_weight.shape[0]
    onehot = jax.nn.one_hot(fgt, K, dtype=jnp.float32)

    ew = emb_weight.astype(jnp.float32)
    emb_l2 = ew / jnp.maximum(jnp.linalg.norm(ew, axis=-1, keepdims=True), 1e-12)
    fx = fx / jnp.maximum(jnp.linalg.norm(fx, axis=-1, keepdims=True), 1e-12)

    cosine = fx @ emb_l2.T
    sine = jnp.sqrt(jnp.clip(1.0 - cosine ** 2, 0.0, 1.0))
    phi = cosine * math.cos(margin) - sine * math.sin(margin)
    phi = jnp.where(cosine > 0.0, phi, cosine)
    logits = onehot * phi + (1.0 - onehot) * cosine
    logits = scale * logits

    ent = entropy.reshape(-1)
    thresh = jnp.percentile(ent, percent)
    mask = (ent <= thresh).astype(jnp.float32)

    positive = jnp.exp(jnp.sum(logits * onehot, axis=-1))
    sum_all = jnp.sum(jnp.exp(logits), axis=-1)
    return -jnp.mean(jnp.log(positive / (sum_all + 1e-7) + 1e-7) * mask)


if __name__ == "__main__":
    # Module config: num_classes=16, embedding_dim=32, scale=30, margin=0.5,
    # init='normal' (initted=True, no kmeans path), easy_margin=True,
    # use_feature=False, orthogonal_reg_weight=0.
    num_classes, embedding_dim = 16, 32
    scale, margin, percent = 30.0, 0.5, 80.0
    B, C, H, W = 2, embedding_dim, 16, 16

    key = jax.random.PRNGKey(0)
    kx, kg, ke, kw = jax.random.split(key, 4)
    x = jax.random.normal(kx, (B, C, H, W), dtype=jnp.float32)
    gt = jax.random.randint(kg, (B, 1, H, W), 0, num_classes, dtype=jnp.int32)
    entropy = jax.random.uniform(ke, (B, H, W), dtype=jnp.float32)
    # nn.Embedding weight, init='normal' -> standard normal (deterministic key).
    emb_weight = jax.random.normal(kw, (num_classes, embedding_dim), dtype=jnp.float32)

    loss = reliable_prototype_loss(x, gt, entropy, emb_weight,
                                   scale=scale, margin=margin, percent=percent)
    loss = jax.block_until_ready(loss)

    ref = _reference(x, gt, entropy, emb_weight,
                     scale=scale, margin=margin, percent=percent)
    ref = jax.block_until_ready(ref)

    assert jnp.allclose(loss, ref, rtol=2e-4, atol=1e-5), (loss, ref)
    print("KERNEL_OK")
</pallas_src>

<mosaic_0001>
module attributes {stable_mosaic.version = 11 : i64} {
  func.func @_rpl_kernel(%arg0: i32, %arg1: i32, %arg2: memref<1x32x256xf32, #tpu.memory_space<vmem>>, %arg3: memref<1x1x256xi32, #tpu.memory_space<vmem>>, %arg4: memref<1x1x256xf32, #tpu.memory_space<vmem>>, %arg5: memref<1x1xf32, #tpu.memory_space<smem>>, %arg6: memref<16x32xf32, #tpu.memory_space<vmem>>, %arg7: memref<1x1x256xf32, #tpu.memory_space<vmem>>) attributes {dimension_semantics = [#tpu.dimension_semantics<parallel>, #tpu.dimension_semantics<arbitrary>], iteration_bounds = array<i64: 2, 1>, scalar_prefetch = 0 : i64, scratch_operands = 0 : i64, tpu.core_type = #tpu.core_type<tc>, window_params = [{transform_indices = @transform_0, window_bounds = array<i64: 1, 32, 256>}, {transform_indices = @transform_1, window_bounds = array<i64: 1, 1, 256>}, {transform_indices = @transform_2, window_bounds = array<i64: 1, 1, 256>}, {transform_indices = @transform_3, window_bounds = array<i64: 1, 1>}, {pipeline_mode = #tpu.pipeline_mode<synchronous>, transform_indices = @transform_4, window_bounds = array<i64: 16, 32>}, {transform_indices = @transform_5, window_bounds = array<i64: 1, 1, 256>}]} {
    %c0 = arith.constant 0 : index
    %c0_0 = arith.constant 0 : index
    %c0_1 = arith.constant 0 : index
    %0 = vector.load %arg2[%c0, %c0_0, %c0_1] : memref<1x32x256xf32, #tpu.memory_space<vmem>>, vector<1x32x256xf32>
    %1 = vector.shape_cast %0 : vector<1x32x256xf32> to vector<32x256xf32>
    %c0_2 = arith.constant 0 : index
    %c0_3 = arith.constant 0 : index
    %c0_4 = arith.constant 0 : index
    %2 = vector.load %arg3[%c0_2, %c0_3, %c0_4] : memref<1x1x256xi32, #tpu.memory_space<vmem>>, vector<1x1x256xi32>
    %3 = vector.shape_cast %2 : vector<1x1x256xi32> to vector<1x256xi32>
    %c0_5 = arith.constant 0 : index
    %c0_6 = arith.constant 0 : index
    %c0_7 = arith.constant 0 : index
    %4 = vector.load %arg4[%c0_5, %c0_6, %c0_7] : memref<1x1x256xf32, #tpu.memory_space<vmem>>, vector<1x1x256xf32>
    %5 = vector.shape_cast %4 : vector<1x1x256xf32> to vector<1x256xf32>
    %c0_8 = arith.constant 0 : index
    %c0_9 = arith.constant 0 : index
    %6 = vector.load %arg6[%c0_8, %c0_9] : memref<16x32xf32, #tpu.memory_space<vmem>>, vector<16x32xf32>
    %7 = arith.mulf %1, %1 : vector<32x256xf32>
    %cst = arith.constant dense<0.000000e+00> : vector<256xf32>
    %8 = vector.multi_reduction <add>, %7, %cst [0] : vector<32x256xf32> to vector<256xf32>
    %9 = vector.shape_cast %8 : vector<256xf32> to vector<1x256xf32>
    %cst_10 = arith.constant 1.000000e-24 : f32
    %10 = vector.broadcast %cst_10 : f32 to vector<1x256xf32>
    %11 = arith.maximumf %9, %10 : vector<1x256xf32>
    %12 = math.rsqrt %11 : vector<1x256xf32>
    %cst_11 = arith.constant dense<0.000000e+00> : vector<16x256xf32>
    %13 = tpu.matmul %6, %1, %cst_11 {dimension_numbers = #tpu.dot_dimension_numbers<[1], [0], [0], [1], [0, 0, 1, 1], [], []>} : vector<16x32xf32>, vector<32x256xf32>, vector<16x256xf32> -> vector<16x256xf32>
    %14 = vector.broadcast %12 : vector<1x256xf32> to vector<16x256xf32>
    %15 = arith.mulf %13, %14 : vector<16x256xf32>
    %16 = tpu.iota {dimensions = array<i32: 0>} : vector<16x1xi32>
    %17 = vector.broadcast %16 : vector<16x1xi32> to vector<16x256xi32>
    %18 = vector.broadcast %3 : vector<1x256xi32> to vector<16x256xi32>
    %19 = arith.cmpi eq, %17, %18 : vector<16x256xi32>
    %cst_12 = arith.constant 0.000000e+00 : f32
    %20 = vector.broadcast %cst_12 : f32 to vector<16x256xf32>
    %21 = arith.select %19, %15, %20 : vector<16x256xi1>, vector<16x256xf32>
    %cst_13 = arith.constant dense<0.000000e+00> : vector<256xf32>
    %22 = vector.multi_reduction <add>, %21, %cst_13 [0] : vector<16x256xf32> to vector<256xf32>
    %23 = vector.shape_cast %22 : vector<256xf32> to vector<1x256xf32>
    %cst_14 = arith.constant 0.0333333351 : f32
    %24 = vector.broadcast %cst_14 : f32 to vector<1x256xf32>
    %25 = arith.mulf %23, %24 : vector<1x256xf32>
    %26 = arith.mulf %25, %25 : vector<1x256xf32>
    %cst_15 = arith.constant 1.000000e+00 : f32
    %27 = vector.broadcast %cst_15 : f32 to vector<1x256xf32>
    %28 = arith.subf %27, %26 : vector<1x256xf32>
    %cst_16 = arith.constant 0.000000e+00 : f32
    %cst_17 = arith.constant 1.000000e+00 : f32
    %29 = vector.broadcast %cst_16 : f32 to vector<1x256xf32>
    %30 = arith.maximumf %29, %28 : vector<1x256xf32>
    %31 = vector.broadcast %cst_17 : f32 to vector<1x256xf32>
    %32 = arith.minimumf %31, %30 : vector<1x256xf32>
    %33 = math.sqrt %32 : vector<1x256xf32>
    %cst_18 = arith.constant 0.87758255 : f32
    %34 = vector.broadcast %cst_18 : f32 to vector<1x256xf32>
    %35 = arith.mulf %25, %34 : vector<1x256xf32>
    %cst_19 = arith.constant 0.47942555 : f32
    %36 = vector.broadcast %cst_19 : f32 to vector<1x256xf32>
    %37 = arith.mulf %33, %36 : vector<1x256xf32>
    %38 = arith.subf %35, %37 : vector<1x256xf32>
    %cst_20 = arith.constant 0.000000e+00 : f32
    %39 = vector.broadcast %cst_20 : f32 to vector<1x256xf32>
    %40 = arith.cmpf ogt, %25, %39 : vector<1x256xf32>
    %41 = arith.select %40, %38, %25 : vector<1x256xi1>, vector<1x256xf32>
    %cst_21 = arith.constant 3.000000e+01 : f32
    %42 = vector.broadcast %cst_21 : f32 to vector<1x256xf32>
    %43 = arith.mulf %42, %41 : vector<1x256xf32>
    %44 = math.exp %43 : vector<1x256xf32>
    %45 = math.exp %15 : vector<16x256xf32>
    %cst_22 = arith.constant 0.000000e+00 : f32
    %46 = vector.broadcast %cst_22 : f32 to vector<16x256xf32>
    %47 = arith.select %19, %46, %45 : vector<16x256xi1>, vector<16x256xf32>
    %cst_23 = arith.constant dense<0.000000e+00> : vector<256xf32>
    %48 = vector.multi_reduction <add>, %47, %cst_23 [0] : vector<16x256xf32> to vector<256xf32>
    %49 = vector.shape_cast %48 : vector<256xf32> to vector<1x256xf32>
    %50 = arith.addf %49, %44 : vector<1x256xf32>
    %cst_24 = arith.constant 1.000000e-07 : f32
    %51 = vector.broadcast %cst_24 : f32 to vector<1x256xf32>
    %52 = arith.addf %50, %51 : vector<1x256xf32>
    %53 = tpu.reciprocal %52 : vector<1x256xf32> -> vector<1x256xf32>
    %54 = arith.mulf %44, %53 : vector<1x256xf32>
    %cst_25 = arith.constant 1.000000e-07 : f32
    %55 = vector.broadcast %cst_25 : f32 to vector<1x256xf32>
    %56 = arith.addf %54, %55 : vector<1x256xf32>
    %57 = math.log %56 : vector<1x256xf32>
    %c0_26 = arith.constant 0 : index
    %c0_27 = arith.constant 0 : index
    %58 = memref.load %arg5[%c0_26, %c0_27] : memref<1x1xf32, #tpu.memory_space<smem>>
    %59 = vector.broadcast %58 : f32 to vector<1x256xf32>
    %60 = arith.cmpf ole, %5, %59 : vector<1x256xf32>
    %cst_28 = arith.constant 0.000000e+00 : f32
    %61 = vector.broadcast %cst_28 : f32 to vector<1x256xf32>
    %62 = arith.select %60, %57, %61 : vector<1x256xi1>, vector<1x256xf32>
    %c0_i32 = arith.constant 0 : i32
    %63 = arith.cmpi eq, %arg1, %c0_i32 : i32
    %64 = arith.extui %63 : i1 to i32
    %c0_i32_29 = arith.constant 0 : i32
    %65 = arith.cmpi ne, %64, %c0_i32_29 : i32
    scf.if %65 {
      %cst_36 = arith.constant 0.000000e+00 : f32
      %72 = vector.broadcast %cst_36 : f32 to vector<1x256xf32>
      %c0_37 = arith.constant 0 : index
      %c0_38 = arith.constant 0 : index
      %c0_39 = arith.constant 0 : index
      %73 = vector.load %arg7[%c0_37, %c0_38, %c0_39] : memref<1x1x256xf32, #tpu.memory_space<vmem>>, vector<1x1x256xf32>
      %74 = vector.shape_cast %73 : vector<1x1x256xf32> to vector<1x256xf32>
      %75 = vector.shape_cast %72 : vector<1x256xf32> to vector<1x1x256xf32>
      tpu.vector_store %arg7[%c0_37, %c0_38, %c0_39], %75 {strides = array<i32>} : memref<1x1x256xf32, #tpu.memory_space<vmem>>, vector<1x1x256xf32>,
    } else {
    }
    %c0_30 = arith.constant 0 : index
    %c0_31 = arith.constant 0 : index
    %c0_32 = arith.constant 0 : index
    %66 = vector.load %arg7[%c0_30, %c0_31, %c0_32] : memref<1x1x256xf32, #tpu.memory_space<vmem>>, vector<1x1x256xf32>
    %67 = vector.shape_cast %66 : vector<1x1x256xf32> to vector<1x256xf32>
    %68 = arith.addf %67, %62 : vector<1x256xf32>
    %c0_33 = arith.constant 0 : index
    %c0_34 = arith.constant 0 : index
    %c0_35 = arith.constant 0 : index
    %69 = vector.load %arg7[%c0_33, %c0_34, %c0_35] : memref<1x1x256xf32, #tpu.memory_space<vmem>>, vector<1x1x256xf32>
    %70 = vector.shape_cast %69 : vector<1x1x256xf32> to vector<1x256xf32>
    %71 = vector.shape_cast %68 : vector<1x256xf32> to vector<1x1x256xf32>
    tpu.vector_store %arg7[%c0_33, %c0_34, %c0_35], %71 {strides = array<i32>} : memref<1x1x256xf32, #tpu.memory_space<vmem>>, vector<1x1x256xf32>,
    return
  }
  func.func @transform_0(%arg0: i32, %arg1: i32) -> (i32, i32, i32) {
    %c0_i32 = arith.constant 0 : i32
    %c0_i32_0 = arith.constant 0 : i32
    return %arg0, %c0_i32, %arg1 : i32, i32, i32
  }
  func.func @transform_1(%arg0: i32, %arg1: i32) -> (i32, i32, i32) {
    %c0_i32 = arith.constant 0 : i32
    %c0_i32_0 = arith.constant 0 : i32
    return %arg0, %c0_i32, %arg1 : i32, i32, i32
  }
  func.func @transform_2(%arg0: i32, %arg1: i32) -> (i32, i32, i32) {
    %c0_i32 = arith.constant 0 : i32
    %c0_i32_0 = arith.constant 0 : i32
    return %arg0, %c0_i32, %arg1 : i32, i32, i32
  }
  func.func @transform_3(%arg0: i32, %arg1: i32) -> (i32, i32) {
    %c0_i32 = arith.constant 0 : i32
    %c0_i32_0 = arith.constant 0 : i32
    %c0_i32_1 = arith.constant 0 : i32
    return %c0_i32, %c0_i32_0 : i32, i32
  }
  func.func @transform_4(%arg0: i32, %arg1: i32) -> (i32, i32) {
    %c0_i32 = arith.constant 0 : i32
    %c0_i32_0 = arith.constant 0 : i32
    %c0_i32_1 = arith.constant 0 : i32
    return %c0_i32, %c0_i32_0 : i32, i32
  }
  func.func @transform_5(%arg0: i32, %arg1: i32) -> (i32, i32, i32) {
    %c0_i32 = arith.constant 0 : i32
    %c0_i32_0 = arith.constant 0 : i32
    %c0_i32_1 = arith.constant 0 : i32
    return %arg0, %c0_i32, %c0_i32_0 : i32, i32, i32
  }
}

</mosaic_0001>

<llo_original>
// kernel: tpu_custom_call.1
$region0: #{tpu_custom_call.1}
  #allocation0 [shape = 'u32[]', space=smem, size = 0x4, offset = 0x4, fixed_abs, tag = 'smem constant byte address 0x4 - core index']
  #allocation1 [shape = 'u32[144,128]{1,0:T(1,128)}', space=vmem, size = 0x12000, scoped, tag = 'internal scratch']
  #allocation2 [shape = 'f32[1,1]{1,0:T(1,128)S(6)}', space=smem, size = 0x200, scoped, tag = 'scoped memory for tpu_custom_call.1']
  %s0 = inlined_call_operand.hbm [shape: f32[2,32,256], index: 0, kind: input, shape index: {}]
  %s1 = inlined_call_operand.vmem [shape: s32[2,1,256], index: 1, kind: input, shape index: {}]
  %s2 = inlined_call_operand.vmem [shape: f32[2,1,256], index: 2, kind: input, shape index: {}]
  %s3 = inlined_call_operand.<no memory space> [shape: f32[1,1], index: 3, kind: input, shape index: {}]
  %s4 = inlined_call_operand.hbm [shape: f32[16,32], index: 4, kind: input, shape index: {}]
  %s5 = inlined_call_operand.hbm [shape: f32[2,1,256], index: 5, kind: output, shape index: {}]
  %s6 = sld [smem:[#allocation0]]
  $region65: #{tpu_custom_call.1} parent=0
    _
  %s8 = ssub.s32 1, %s6
  %s9 = scalar_select 0, %s8, %s6
  %10 = sst [smem:[#allocation2]] %s3
  $region1: #{tpu_custom_call.1} parent=0
    #allocation3 [shape = 'u8[65536]{0}', space=vmem, size = 0x10000, scoped, tag = 'input window, operand 0']
    #allocation4 [shape = 's32[2]{0}', space=sflag, size = 0x8, scoped, tag = 'scoped memory for tpu_custom_call.1']
    #allocation5 [shape = 's32[2]{0}', space=sflag, size = 0x8, scoped, tag = 'scoped memory for tpu_custom_call.1']
    #allocation6 [shape = 'u8[8192]{0}', space=vmem, size = 0x2000, scoped, tag = 'input window, operand 4, single buffered']
    #allocation7 [shape = 's32[1]{0}', space=sflag, size = 0x4, scoped, tag = 'scoped memory for tpu_custom_call.1']
    #allocation8 [shape = 'u8[2048]{0}', space=vmem, size = 0x800, scoped, tag = 'output window, operand 0']
    %11 = vsyncpa [#allocation4], 0
    %s12 = scalar_lea.sflag [#allocation4], 1
    %13 = vsyncpa %s12, 0
    %14 = vsyncpa [#allocation7], 0
    %15 = vsyncpa [#allocation5], 0
    %s16 = scalar_lea.sflag [#allocation5], 1
    %17 = vsyncpa %s16, 0
    loop: start=0, step=1, limit=4
    $region2: #{tpu_custom_call.1} parent=1 // loop_pre_header
      _
    $region3: #{tpu_custom_call.1} parent=1 // loop_header
      %s19 = sphi 0, %s23
      %p20 = scmp.ge.s32.totalorder %s19, 4
      %s26 = sphi 0, %s38
      %s27 = sphi 0, %s34
      %s28 = sphi 0, %s26
      %s29 = sphi 0, %s27
      %s30 = sphi 0, %s28
      %s31 = sphi 0, %s29
      %s43 = sphi 0, %s45
      %s46 = sphi 0, %s43
      %s47 = sphi 0, %s46
      %s63 = sphi 0, %s47
      %s71 = sphi 0, %s73
      %s74 = sphi 0, %s71
      %s75 = sphi 0, %s74
      %s91 = sphi 0, %s75
      %s99 = sphi 0, %s101
      %s102 = sphi 0, %s99
      %s103 = sphi 0, %s102
      %s119 = sphi 0, %s103
      %s123 = sphi 0, %s123
      %s125 = sphi 0, %s123
      %s126 = sphi 0, %s125
      %s140 = sphi 0, %s126
      %s144 = sphi 0, %s144
      %s146 = sphi 0, %s144
      %s147 = sphi 0, %s146
      %s161 = sphi 0, %s147
      %s167 = sphi 0, %s169
      %s170 = sphi 0, %s167
      %s171 = sphi 0, %s170
      %s187 = sphi 0, %s171
    $region4: #{tpu_custom_call.1} parent=1 // loop_header_branch
      %22 = sbr.rel (%p20) target = $region8
    $region5: #{tpu_custom_call.1} parent=1 // loop_body
      %s24 = ssub.s32 %s19, 1
      %s25 = ssub.s32 %s19, 2
      %s32 = sadd.s32 1, %s27
      %p33 = scmp.ge.s32.totalorder %s32, 1
      %s34 = scalar_select %p33, 0, %s32
      %s35 = sadd.s32 1, %s26
      %s36 = scalar_select %p33, %s35, %s26
      %p37 = scmp.ge.s32.totalorder %s36, 2
      %s38 = scalar_select %p37, 0, %s36
      %s39 = ssub.s32 %s26, %s38
      %s40 = ssub.s32 %s27, %s34
      %s41 = sor.u32 %s39, %s40
      %p42 = scmp.eq.s32.totalorder %s41, 0
      %s44 = sadd.s32 %s43, 1
      %s45 = scalar_select %p42, %s43, %s44
      %p48 = pneg %p42
      %p49 = scmp.eq.s32.totalorder %s19, 1
      %p50 = por %p48, %p49
      %p51 = scmp.ne.s32.totalorder %s43, %s46
      %p52 = scmp.eq.s32.totalorder %s19, 0
      %p53 = por %p51, %p52
      %p54 = scmp.ne.s32.totalorder %s43, %s46
      %p55 = scmp.eq.s32.totalorder %s24, 1
      %p56 = por %p54, %p55
      %p57 = scmp.ne.s32.totalorder %s46, %s47
      %p58 = scmp.eq.s32.totalorder %s24, 0
      %p59 = por %p57, %p58
      %p60 = scmp.ne.s32.totalorder %s46, %s47
      %p61 = scmp.eq.s32.totalorder %s25, 1
      %p62 = por %p60, %p61
      %p64 = scmp.ne.s32.totalorder %s47, %s63
      %p65 = scmp.eq.s32.totalorder %s25, 0
      %p66 = por %p64, %p65
      %s67 = ssub.s32 %s26, %s38
      %s68 = ssub.s32 %s27, %s34
      %s69 = sor.u32 %s67, %s68
      %p70 = scmp.eq.s32.totalorder %s69, 0
      %s72 = sadd.s32 %s71, 1
      %s73 = scalar_select %p70, %s71, %s72
      %p76 = pneg %p70
      %p77 = scmp.eq.s32.totalorder %s19, 1
      %p78 = por %p76, %p77
      %p79 = scmp.ne.s32.totalorder %s71, %s74
      %p80 = scmp.eq.s32.totalorder %s19, 0
      %p81 = por %p79, %p80
      %p82 = scmp.ne.s32.totalorder %s71, %s74
      %p83 = scmp.eq.s32.totalorder %s24, 1
      %p84 = por %p82, %p83
      %p85 = scmp.ne.s32.totalorder %s74, %s75
      %p86 = scmp.eq.s32.totalorder %s24, 0
      %p87 = por %p85, %p86
      %p88 = scmp.ne.s32.totalorder %s74, %s75
      %p89 = scmp.eq.s32.totalorder %s25, 1
      %p90 = por %p88, %p89
      %p92 = scmp.ne.s32.totalorder %s75, %s91
      %p93 = scmp.eq.s32.totalorder %s25, 0
      %p94 = por %p92, %p93
      %s95 = ssub.s32 %s26, %s38
      %s96 = ssub.s32 %s27, %s34
      %s97 = sor.u32 %s95, %s96
      %p98 = scmp.eq.s32.totalorder %s97, 0
      %s100 = sadd.s32 %s99, 1
      %s101 = scalar_select %p98, %s99, %s100
      %p104 = pneg %p98
      %p105 = scmp.eq.s32.totalorder %s19, 1
      %p106 = por %p104, %p105
      %p107 = scmp.ne.s32.totalorder %s99, %s102
      %p108 = scmp.eq.s32.totalorder %s19, 0
      %p109 = por %p107, %p108
      %p110 = scmp.ne.s32.totalorder %s99, %s102
      %p111 = scmp.eq.s32.totalorder %s24, 1
      %p112 = por %p110, %p111
      %p113 = scmp.ne.s32.totalorder %s102, %s103
      %p114 = scmp.eq.s32.totalorder %s24, 0
      %p115 = por %p113, %p114
      %p116 = scmp.ne.s32.totalorder %s102, %s103
      %p117 = scmp.eq.s32.totalorder %s25, 1
      %p118 = por %p116, %p117
      %p120 = scmp.ne.s32.totalorder %s103, %s119
      %p121 = scmp.eq.s32.totalorder %s25, 0
      %p122 = por %p120, %p121
      %s124 = sadd.s32 %s123, 1
      %p127 = scmp.eq.s32.totalorder %s19, 1
      %p128 = scmp.ne.s32.totalorder %s123, %s125
      %p129 = scmp.eq.s32.totalorder %s19, 0
      %p130 = por %p128, %p129
      %p131 = scmp.ne.s32.totalorder %s123, %s125
      %p132 = scmp.eq.s32.totalorder %s24, 1
      %p133 = por %p131, %p132
      %p134 = scmp.ne.s32.totalorder %s125, %s126
      %p135 = scmp.eq.s32.totalorder %s24, 0
      %p136 = por %p134, %p135
      %p137 = scmp.ne.s32.totalorder %s125, %s126
      %p138 = scmp.eq.s32.totalorder %s25, 1
      %p139 = por %p137, %p138
      %p141 = scmp.ne.s32.totalorder %s126, %s140
      %p142 = scmp.eq.s32.totalorder %s25, 0
      %p143 = por %p141, %p142
      %s145 = sadd.s32 %s144, 1
      %p148 = scmp.eq.s32.totalorder %s19, 1
      %p149 = scmp.ne.s32.totalorder %s144, %s146
      %p150 = scmp.eq.s32.totalorder %s19, 0
      %p151 = por %p149, %p150
      %p152 = scmp.ne.s32.totalorder %s144, %s146
      %p153 = scmp.eq.s32.totalorder %s24, 1
      %p154 = por %p152, %p153
      %p155 = scmp.ne.s32.totalorder %s146, %s147
      %p156 = scmp.eq.s32.totalorder %s24, 0
      %p157 = por %p155, %p156
      %p158 = scmp.ne.s32.totalorder %s146, %s147
      %p159 = scmp.eq.s32.totalorder %s25, 1
      %p160 = por %p158, %p159
      %p162 = scmp.ne.s32.totalorder %s147, %s161
      %p163 = scmp.eq.s32.totalorder %s25, 0
      %p164 = por %p162, %p163
      %s165 = ssub.s32 %s26, %s38
      %p166 = scmp.eq.s32.totalorder %s165, 0
      %s168 = sadd.s32 %s167, 1
      %s169 = scalar_select %p166, %s167, %s168
      %p172 = pneg %p166
      %p173 = scmp.eq.s32.totalorder %s19, 1
      %p174 = por %p172, %p173
      %p175 = scmp.ne.s32.totalorder %s167, %s170
      %p176 = scmp.eq.s32.totalorder %s19, 0
      %p177 = por %p175, %p176
      %p178 = scmp.ne.s32.totalorder %s167, %s170
      %p179 = scmp.eq.s32.totalorder %s24, 1
      %p180 = por %p178, %p179
      %p181 = scmp.ne.s32.totalorder %s170, %s171
      %p182 = scmp.eq.s32.totalorder %s24, 0
      %p183 = por %p181, %p182
      %p184 = scmp.ne.s32.totalorder %s170, %s171
      %p185 = scmp.eq.s32.totalorder %s25, 1
      %p186 = por %p184, %p185
      %p188 = scmp.ne.s32.totalorder %s171, %s187
      %p189 = scmp.eq.s32.totalorder %s25, 0
      %p190 = por %p188, %p189
      %p191 = scmp.le.s32.totalorder 1, %s19
      %p192 = scmp.lt.s32.totalorder %s19, 3
      %p193 = pnand %p191, %p192
      %p194 = pneg %p193
      // Predicated region
      $region9: #{tpu_custom_call.1} parent=5 // pred_check
        _
      $region10: #{tpu_custom_call.1} parent=5 // pred_check_branch
        %196 = sbr.rel (%p193) target = $region12
      $region11: #{tpu_custom_call.1} parent=5 // pred_region
        %s197 = ssub.s32 %s19, 1
        // Predicated region
        $region13: #{tpu_custom_call.1} parent=11 // pred_check
          %p198 = pneg %p136
        $region14: #{tpu_custom_call.1} parent=11 // pred_check_branch
          %200 = sbr.rel (%p198) target = $region16
        $region15: #{tpu_custom_call.1} parent=11 // pred_region
          _
        $region16: #{tpu_custom_call.1} parent=11 // pred_fallthru
          _
        // Predicated region
        $region17: #{tpu_custom_call.1} parent=11 // pred_check
          %p201 = pneg %p157
        $region18: #{tpu_custom_call.1} parent=11 // pred_check_branch
          %203 = sbr.rel (%p201) target = $region20
        $region19: #{tpu_custom_call.1} parent=11 // pred_region
          %s205 = ssub.s32 256, 256
          %206 = vsyncadd [#allocation7], %s205
          %s207 = sshll.u32 [#allocation6], 4
          %s208 = int_to_ptr.vmem [resolvable:$true] %s207
          %213 = dma.hbm_to_vmem [thread:$0]  %s4, 256, %s208, [#allocation7], 128, 128, 8
        $region20: #{tpu_custom_call.1} parent=11 // pred_fallthru
          _
      $region12: #{tpu_custom_call.1} parent=5 // pred_fallthru
        _
      %p214 = scmp.lt.s32.totalorder %s19, 2
      // Predicated region
      $region21: #{tpu_custom_call.1} parent=5 // pred_check
        %p215 = pneg %p214
      $region22: #{tpu_custom_call.1} parent=5 // pred_check_branch
        %217 = sbr.rel (%p215) target = $region24
      $region23: #{tpu_custom_call.1} parent=5 // pred_region
        // Predicated region
        $region25: #{tpu_custom_call.1} parent=23 // pred_check
          %p218 = pneg %p53
        $region26: #{tpu_custom_call.1} parent=23 // pred_check_branch
          %220 = sbr.rel (%p218) target = $region28
        $region27: #{tpu_custom_call.1} parent=23 // pred_region
          %s221 = sand.u32 %s43, 1
          %s222 = scalar_lea.sflag [#allocation4], %s221
          %s223 = sand.u32 %s43, 1
          %s224 = smul.addr %s223, 64
          %s225 = scalar_lea.vmem [#allocation3], %s224
          %s226 = smul.u32 2, %s27
          %s228 = ssub.s32 1024, 1024
          %229 = vsyncadd %s222, %s228
          %s230 = smul.addr %s26, 8
          %s231 = sadd.s32 %s226, %s230
          %s232 = smul.addr %s231, 128
          %s233 = scalar_lea.hbm %s0, %s232
          %s234 = sshll.u32 %s225, 4
          %s235 = int_to_ptr.vmem [resolvable:$true] %s234
          %240 = dma.hbm_to_vmem [thread:$0]  %s233, 1024, %s235, %s222, 256, 256, 16
        $region28: #{tpu_custom_call.1} parent=23 // pred_fallthru
          _
        // Predicated region
        $region29: #{tpu_custom_call.1} parent=23 // pred_check
          %p241 = pneg %p81
        $region30: #{tpu_custom_call.1} parent=23 // pred_check_branch
          %243 = sbr.rel (%p241) target = $region32
        $region31: #{tpu_custom_call.1} parent=23 // pred_region
          %s244 = smul.u32 2, %s27
          %p245 = scmp.lt.s32.totalorder %s26, 1
          %s246 = scalar_select %p245, %s26, 1
          %p247 = scmp.lt.s32.totalorder %s244, 1
          %s248 = scalar_select %p247, %s244, 1
          %s249 = smul.addr %s246, 2
          %s250 = sadd.s32 %s248, %s249
          %s251 = scalar_lea.vmem %s1, %s250
          %s252 = smul.u32 2, %s27
        $region32: #{tpu_custom_call.1} parent=23 // pred_fallthru
          _
        // Predicated region
        $region33: #{tpu_custom_call.1} parent=23 // pred_check
          %p253 = pneg %p109
        $region34: #{tpu_custom_call.1} parent=23 // pred_check_branch
          %255 = sbr.rel (%p253) target = $region36
        $region35: #{tpu_custom_call.1} parent=23 // pred_region
          %s256 = smul.u32 2, %s27
          %p257 = scmp.lt.s32.totalorder %s26, 1
          %s258 = scalar_select %p257, %s26, 1
          %p259 = scmp.lt.s32.totalorder %s256, 1
          %s260 = scalar_select %p259, %s256, 1
          %s261 = smul.addr %s258, 2
          %s262 = sadd.s32 %s260, %s261
          %s263 = scalar_lea.vmem %s2, %s262
          %s264 = smul.u32 2, %s27
        $region36: #{tpu_custom_call.1} parent=23 // pred_fallthru
          _
      $region24: #{tpu_custom_call.1} parent=5 // pred_fallthru
        _
      %p265 = scmp.le.s32.totalorder 1, %s19
      %p266 = scmp.lt.s32.totalorder %s19, 3
      %p267 = pnand %p265, %p266
      %p268 = pneg %p267
      // Predicated region
      $region37: #{tpu_custom_call.1} parent=5 // pred_check
        _
      $region38: #{tpu_custom_call.1} parent=5 // pred_check_branch
        %270 = sbr.rel (%p267) target = $region40
      $region39: #{tpu_custom_call.1} parent=5 // pred_region
        %s271 = ssub.s32 %s19, 1
        %s272 = sand.u32 %s46, 1
        %s273 = scalar_lea.sflag [#allocation4], %s272
        %s274 = sand.u32 %s46, 1
        %s275 = smul.addr %s274, 64
        %s276 = scalar_lea.vmem [#allocation3], %s275
        // Predicated region
        $region41: #{tpu_custom_call.1} parent=39 // pred_check
          %p277 = pneg %p59
        $region42: #{tpu_custom_call.1} parent=39 // pred_check_branch
          %279 = sbr.rel (%p277) target = $region44
        $region43: #{tpu_custom_call.1} parent=39 // pred_region
          %280 = dma.done %s273, 1024
        $region44: #{tpu_custom_call.1} parent=39 // pred_fallthru
          _
        // Predicated region
        $region45: #{tpu_custom_call.1} parent=39 // pred_check
          %p281 = pneg %p157
        $region46: #{tpu_custom_call.1} parent=39 // pred_check_branch
          %283 = sbr.rel (%p281) target = $region48
        $region47: #{tpu_custom_call.1} parent=39 // pred_region
          %284 = dma.done [#allocation7], 256
        $region48: #{tpu_custom_call.1} parent=39 // pred_fallthru
          _
        %s285 = sand.u32 %s46, 1
        %s286 = scalar_lea.sflag [#allocation4], %s285
        %s287 = sand.u32 %s46, 1
        %s288 = smul.addr %s287, 64
        %s289 = scalar_lea.vmem [#allocation3], %s288
        %p290 = pneg %p59
        %p291 = pneg %p56
        %s292 = smul.u32 2, %s29
        %p293 = scmp.lt.s32.totalorder %s28, 1
        %s294 = scalar_select %p293, %s28, 1
        %p295 = scmp.lt.s32.totalorder %s292, 1
        %s296 = scalar_select %p295, %s292, 1
        %s297 = smul.addr %s294, 2
        %s298 = sadd.s32 %s296, %s297
        %s299 = scalar_lea.vmem %s1, %s298
        %p300 = pneg %p87
        %p301 = pneg %p84
        %s302 = smul.u32 2, %s29
        %p303 = scmp.lt.s32.totalorder %s28, 1
        %s304 = scalar_select %p303, %s28, 1
        %p305 = scmp.lt.s32.totalorder %s302, 1
        %s306 = scalar_select %p305, %s302, 1
        %s307 = smul.addr %s304, 2
        %s308 = sadd.s32 %s306, %s307
        %s309 = scalar_lea.vmem %s2, %s308
        %p310 = pneg %p115
        %p311 = pneg %p112
        %p312 = pneg %p136
        %p313 = pneg %p133
        %p314 = pneg %p157
        %p315 = pneg %p154
        %p316 = pneg %p183
        %p317 = pneg %p180
        %s318 = sand.u32 %s170, 1
        %s319 = scalar_lea.sflag [#allocation5], %s318
        %s320 = sand.u32 %s170, 1
        %s321 = smul.addr %s320, 2
        %s322 = scalar_lea.vmem [#allocation8], %s321
        %s323 = smul.u32 2, %s29
        %s324 = smul.u32 2, %s29
        %p325 = scmp.lt.s32.totalorder %s28, 1
        %s326 = scalar_select %p325, %s28, 1
        %p327 = scmp.lt.s32.totalorder %s324, 1
        %s328 = scalar_select %p327, %s324, 1
        %s329 = smul.addr %s326, 2
        %s330 = sadd.s32 %s328, %s329
        %s331 = scalar_lea.vmem %s1, %s330
        %s332 = smul.u32 2, %s29
        %s333 = smul.u32 2, %s29
        %p334 = scmp.lt.s32.totalorder %s28, 1
        %s335 = scalar_select %p334, %s28, 1
        %p336 = scmp.lt.s32.totalorder %s333, 1
        %s337 = scalar_select %p336, %s333, 1
        %s338 = smul.addr %s335, 2
        %s339 = sadd.s32 %s337, %s338
        %s340 = scalar_lea.vmem %s2, %s339
        %s341 = smul.u32 2, %s29
        %v342 = vld [vmem:[%s276] sm:$0xff]
        %v343 = vld [vmem:[%s276 + $0x8] sm:$0xff]
        %v344 = vld [vmem:[%s276 + $0x10] sm:$0xff]
        %v345 = vld [vmem:[%s276 + $0x18] sm:$0xff]
        %v346 = vld [vmem:[%s276 + $0x20] sm:$0xff]
        %v347 = vld [vmem:[%s276 + $0x28] sm:$0xff]
        %v348 = vld [vmem:[%s276 + $0x30] sm:$0xff]
        %v349 = vld [vmem:[%s276 + $0x38] sm:$0xff]
        %v350 = vld [vmem:[%s331] sm:$0x3]
        %v351 = vld [vmem:[%s340] sm:$0x3]
        %v352 = vld [vmem:[#allocation6] sm:$0xff]
        %v353 = vld [vmem:[#allocation6 + $0x8] sm:$0xff]
        %v354 = vmul.f32 %v342, %v342
        %v355 = vmul.f32 %v343, %v343
        %v356 = vmul.f32 %v344, %v344
        %v357 = vmul.f32 %v345, %v345
        %v358 = vmul.f32 %v346, %v346
        %v359 = vmul.f32 %v347, %v347
        %v360 = vmul.f32 %v348, %v348
        %v361 = vmul.f32 %v349, %v349
        %v362 = vadd.f32 %v354, %v356
        %v363 = vadd.f32 %v362, %v358
        %v364 = vadd.f32 %v363, %v360
        %v365 = vrot.slane %v364, 4
        %v366 = vadd.f32 %v364, %v365
        %v367 = vrot.slane %v366, 2
        %v368 = vadd.f32 %v366, %v367
        %v369 = vrot.slane %v368, 1
        %v370 = vadd.f32 %v368, %v369
        %v371 = vadd.f32 %v355, %v357
        %v372 = vadd.f32 %v371, %v359
        %v373 = vadd.f32 %v372, %v361
        %v374 = vrot.slane %v373, 4
        %v375 = vadd.f32 %v373, %v374
        %v376 = vrot.slane %v375, 2
        %v377 = vadd.f32 %v375, %v376
        %v378 = vrot.slane %v377, 1
        %v379 = vadd.f32 %v377, %v378
        %v380 = vmax.f32 %v370, 1e-24
        %v381 = vmax.f32 %v379, 1e-24
        %v382 = vrsqrt.pop %v380
        %v383 = vrsqrt.pop %v381
        %vm384 = vcmask 261120
        %v386 = vsel %vm384, %v352, 0
        %v389 = vsel %vm384, %v353, 0
        %391 = vmatprep.subr.mxu0 %v343
        %392 = vmatpush1.msra.mxu0 %v342
        %393 = vmatprep.subr.mxu0 %v345
        %394 = vmatpush1.msra.mxu0 %v344
        %395 = vmatprep.subr.mxu0 %v347
        %396 = vmatpush1.msra.mxu0 %v346
        %397 = vmatprep.subr.mxu0 %v349
        %398 = vmatpush1.msra.mxu0 %v348
        %399 = vmatprep.subr.mxu0 0.0
        %400 = vmatpush1.msra.mxu0 0.0
        %401 = vmatprep.subr.mxu0 0.0
        %402 = vmatpush1.msra.mxu0 0.0
        %403 = vmatprep.subr.mxu0 0.0
        %404 = vmatpush1.msra.mxu0 0.0
        %405 = vmatprep.subr.mxu0 0.0
        %406 = vmatpush1.msra.mxu0 0.0
        %407 = vmatprep.subr.mxu0 0.0
        %408 = vmatpush1.msra.mxu0 0.0
        %409 = vmatprep.subr.mxu0 0.0
        %410 = vmatpush1.msra.mxu0 0.0
        %411 = vmatprep.subr.mxu0 0.0
        %412 = vmatpush1.msra.mxu0 0.0
        %413 = vmatprep.subr.mxu0 0.0
        %414 = vmatpush1.msra.mxu0 0.0
        %415 = vmatprep.subr.mxu0 0.0
        %416 = vmatpush1.msra.mxu0 0.0
        %417 = vmatprep.subr.mxu0 0.0
        %418 = vmatpush1.msra.mxu0 0.0
        %419 = vmatprep.subr.mxu0 0.0
        %420 = vmatpush1.msra.mxu0 0.0
        %421 = vmatprep.subr.mxu0 0.0
        %422 = vmatpush1.msra.mxu0 0.0
        %423 = vmatprep.subr.mxu0 0.0
        %424 = vmatpush1.msra.mxu0 0.0
        %425 = vmatprep.subr.mxu0 0.0
        %426 = vmatpush1.msra.mxu0 0.0
        %427 = vmatprep.subr.mxu0 0.0
        %428 = vmatpush1.msra.mxu0 0.0
        %429 = vmatprep.subr.mxu0 0.0
        %430 = vmatpush1.msra.mxu0 0.0
        %431 = vmatprep.subr.mxu0 0.0
        %432 = vmatpush1.msra.mxu0 0.0
        %433 = vmatprep.subr.mxu0 0.0
        %434 = vmatpush1.msra.mxu0 0.0
        %435 = vmatprep.subr.mxu0 0.0
        %436 = vmatpush1.msra.mxu0 0.0
        %437 = vmatprep.subr.mxu0 0.0
        %438 = vmatpush1.msra.mxu0 0.0
        %439 = vmatprep.subr.mxu0 0.0
        %440 = vmatpush1.msra.mxu0 0.0
        %441 = vmatprep.subr.mxu0 0.0
        %442 = vmatpush1.msra.mxu0 0.0
        %443 = vmatprep.subr.mxu0 0.0
        %444 = vmatpush1.msra.mxu0 0.0
        %445 = vmatprep.subr.mxu0 0.0
        %446 = vmatpush1.msra.mxu0 0.0
        %447 = vmatprep.subr.mxu0 0.0
        %448 = vmatpush1.msra.mxu0 0.0
        %449 = vmatprep.subr.mxu0 0.0
        %450 = vmatpush1.msra.mxu0 0.0
        %451 = vmatprep.subr.mxu0 0.0
        %452 = vmatpush1.msra.mxu0 0.0
        %453 = vmatprep.subr.mxu0 0.0
        %454 = vmatpush1.msra.mxu0 0.0
        %455 = vmatprep.mubr.f32.mxu0 0.0
        %456 = vmatmul.mubr.f32.gmra.mrb[0].mxu0 %v386
        %v457 = vpop.f32.mrb[0].mxu0
        %v458 = vadd.f32 0.0, %v457
        %v459 = vpop.f32.mrb[0].mxu0
        %v460 = vadd.f32 0.0, %v459
        %461 = vmatprep.mubr.f32.mxu0 0.0
        %462 = vmatmul.mubr.f32.gmra.mrb[0].mxu0 %v389
        %v463 = vpop.f32.mrb[0].mxu0
        %v464 = vadd.f32 0.0, %v463
        %v465 = vpop.f32.mrb[0].mxu0
        %v466 = vadd.f32 0.0, %v465
        %467 = vdwg.mxu0
        %v468 = vmul.f32 %v458, %v382
        %v469 = vmul.f32 %v460, %v383
        %v470 = vmul.f32 %v464, %v382
        %v471 = vmul.f32 %v466, %v383
        %v472 = vlaneseq
        %v473 = vshrl.u32 %v472, 7
        %v474 = vadd.s32 %v473, 8
        %v475 = vlaneseq
        %v476 = vshrl.u32 %v475, 7
        %v477 = vsub.s32 0, %v476
        %v478 = vrot.slane %v350, %v477
        %v479 = vlaneseq
        %v480 = vshrl.u32 %v479, 7
        %v481 = vsub.s32 1, %v480
        %v482 = vrot.slane %v350, %v481
        %vm483 = vcmp.eq.s32.totalorder %v473, %v478
        %vm484 = vcmp.eq.s32.totalorder %v473, %v482
        %vm485 = vcmp.eq.s32.totalorder %v474, %v478
        %vm486 = vcmp.eq.s32.totalorder %v474, %v482
        %v487 = vsel %vm483, %v468, 0.0
        %v488 = vsel %vm484, %v469, 0.0
        %v489 = vsel %vm485, %v470, 0.0
        %v490 = vsel %vm486, %v471, 0.0
        %v491 = vadd.f32 %v487, %v489
        %v492 = vrot.slane %v491, 4
        %v493 = vadd.f32 %v491, %v492
        %v494 = vrot.slane %v493, 2
        %v495 = vadd.f32 %v493, %v494
        %v496 = vrot.slane %v495, 1
        %v497 = vadd.f32 %v495, %v496
        %v498 = vadd.f32 %v488, %v490
        %v499 = vrot.slane %v498, 4
        %v500 = vadd.f32 %v498, %v499
        %v501 = vrot.slane %v500, 2
        %v502 = vadd.f32 %v500, %v501
        %v503 = vrot.slane %v502, 1
        %v504 = vadd.f32 %v502, %v503
        %v505 = vmul.f32 %v497, 0.033333335
        %v506 = vmul.f32 %v504, 0.033333335
        %v507 = vmul.f32 %v505, %v505
        %v508 = vmul.f32 %v506, %v506
        %v509 = vsub.f32 1.0, %v507
        %v510 = vsub.f32 1.0, %v508
        %v511 = vmax.f32 %v509, 0.0
        %v512 = vmax.f32 %v510, 0.0
        %v513 = vmin.f32 %v511, 1.0
        %v514 = vmin.f32 %v512, 1.0
        %v515 = vrsqrt.pop %v513
        %v516 = vmul.f32 %v513, %v515
        %vm517 = vcmp.eq.f32.partialorder %v513, inf
        %v518 = vsel %vm517, %v513, %v516
        %vm519 = vcmp.eq.f32.partialorder %v513, 0.0
        %v520 = vand.u32 %v513, 2147483648
        %v521 = vsel %vm519, %v520, %v518
        %v522 = vrsqrt.pop %v514
        %v523 = vmul.f32 %v514, %v522
        %vm524 = vcmp.eq.f32.partialorder %v514, inf
        %v525 = vsel %vm524, %v514, %v523
        %vm526 = vcmp.eq.f32.partialorder %v514, 0.0
        %v527 = vand.u32 %v514, 2147483648
        %v528 = vsel %vm526, %v527, %v525
        %v529 = vmul.f32 %v505, 0.87758255
        %v530 = vmul.f32 %v506, 0.87758255
        %v531 = vmul.f32 %v521, 0.47942555
        %v532 = vmul.f32 %v528, 0.47942555
        %v533 = vsub.f32 %v529, %v531
        %v534 = vsub.f32 %v530, %v532
        %vm535 = vcmp.gt.f32.partialorder %v505, 0.0
        %vm536 = vcmp.gt.f32.partialorder %v506, 0.0
        %v537 = vsel %vm535, %v533, %v505
        %v538 = vsel %vm536, %v534, %v506
        %v539 = vmul.f32 %v537, 30.0
        %v540 = vmul.f32 %v538, 30.0
        %v541 = vmul.f32 %v539, 1.442695
        %v542 = vpow.pop %v541
        %v543 = vmul.f32 %v540, 1.442695
        %v544 = vpow.pop %v543
        %v545 = vmul.f32 %v468, 1.442695
        %v546 = vpow.pop %v545
        %v547 = vmul.f32 %v469, 1.442695
        %v548 = vpow.pop %v547
        %v549 = vmul.f32 %v470, 1.442695
        %v550 = vpow.pop %v549
        %v551 = vmul.f32 %v471, 1.442695
        %v552 = vpow.pop %v551
        %v553 = vsel %vm483, 0.0, %v546
        %v554 = vsel %vm484, 0.0, %v548
        %v555 = vsel %vm485, 0.0, %v550
        %v556 = vsel %vm486, 0.0, %v552
        %v557 = vadd.f32 %v553, %v555
        %v558 = vrot.slane %v557, 4
        %v559 = vadd.f32 %v557, %v558
        %v560 = vrot.slane %v559, 2
        %v561 = vadd.f32 %v559, %v560
        %v562 = vrot.slane %v561, 1
        %v563 = vadd.f32 %v561, %v562
        %v564 = vadd.f32 %v554, %v556
        %v565 = vrot.slane %v564, 4
        %v566 = vadd.f32 %v564, %v565
        %v567 = vrot.slane %v566, 2
        %v568 = vadd.f32 %v566, %v567
        %v569 = vrot.slane %v568, 1
        %v570 = vadd.f32 %v568, %v569
        %v571 = vadd.f32 %v563, %v542
        %v572 = vadd.f32 %v570, %v544
        %v573 = vadd.f32 %v571, 1e-07
        %v574 = vadd.f32 %v572, 1e-07
        %v575 = vrcp.pop %v573
        %v576 = vrcp.pop %v574
        %v577 = vmul.f32 %v542, %v575
        %v578 = vmul.f32 %v544, %v576
        %v579 = vadd.f32 %v577, 1e-07
        %v580 = vadd.f32 %v578, 1e-07
        %v581 = vlog2.pop %v579
        %v582 = vmul.f32 %v581, 0.6931472
        %v583 = vlog2.pop %v580
        %v584 = vmul.f32 %v583, 0.6931472
        %s585 = sld [smem:[#allocation2]]
        %v586 = vstv %s585
        %vm587 = vcmp.le.f32.partialorder %v351, %v586
        %v590 = vcombine.low %v582, %v584
        %v592 = vunpack.c.l.s4 1966171168
        %v593 = vunpack.c.0.s8 %v592
        %v594 = vlaneseq
        %v595 = vshrl.u32 %v594, 7
        %v596 = vsub.s32 %v593, %v595
        %v597 = vrot.slane %v590, %v596
        %v599 = vunpack.c.l.s4 1966171168
        %v600 = vunpack.c.0.s8 %v599
        %v601 = vlaneseq
        %v602 = vshrl.u32 %v601, 7
        %v603 = vsub.s32 %v600, %v602
        %v604 = vrot.slane %v597, %v603
        %v606 = vsel %vm587, %v604, 0.0
        %p607 = scmp.eq.s32.totalorder %s29, 0
        // Predicated region
        $region49: #{tpu_custom_call.1} parent=39 // pred_check
          %p608 = pneg %p607
        $region50: #{tpu_custom_call.1} parent=39 // pred_check_branch
          %610 = sbr.rel (%p608) target = $region52
        $region51: #{tpu_custom_call.1} parent=39 // pred_region
          %v611 = vlaneseq
          %vm612 = vcmp.ge.s32.totalorder %v611, 0
          %vm613 = vcmp.lt.s32.totalorder %v611, 256
          %vm614 = vmand %vm612, %vm613
          %615 = vst.msk [vmem:[%s322] sm:$0x3] %vm614, 0.0
        $region52: #{tpu_custom_call.1} parent=39 // pred_fallthru
          _
        %v616 = vld [vmem:[%s322] sm:$0x3]
        %v617 = vadd.f32 %v616, %v606
        %v618 = vlaneseq
        %vm619 = vcmp.ge.s32.totalorder %v618, 0
        %vm620 = vcmp.lt.s32.totalorder %v618, 256
        %vm621 = vmand %vm619, %vm620
        %622 = vst.msk [vmem:[%s322] sm:$0x3] %vm621, %v617
        %s623 = sand.u32 %s170, 1
        %s624 = scalar_lea.sflag [#allocation5], %s623
        %s625 = sand.u32 %s170, 1
        %s626 = smul.addr %s625, 2
        %s627 = scalar_lea.vmem [#allocation8], %s626
        // Predicated region
        $region53: #{tpu_custom_call.1} parent=39 // pred_check
          %p628 = pneg %p180
        $region54: #{tpu_custom_call.1} parent=39 // pred_check_branch
          %630 = sbr.rel (%p628) target = $region56
        $region55: #{tpu_custom_call.1} parent=39 // pred_region
          %s632 = ssub.s32 32, 32
          %633 = vsyncadd %s624, %s632
          %s634 = smul.addr %s28, 2
          %s635 = smul.addr %s634, 16
          %s636 = scalar_lea.hbm %s5, %s635
          %s638 = sshll.u32 %s627, 4
          %s639 = int_to_ptr.vmem [resolvable:$true] %s638
          %641 = dma.vmem_to_hbm [thread:$0]  %s639, 32, %s636, %s624
        $region56: #{tpu_custom_call.1} parent=39 // pred_fallthru
          _
      $region40: #{tpu_custom_call.1} parent=5 // pred_fallthru
        _
      %p642 = scmp.le.s32.totalorder 2, %s19
      // Predicated region
      $region57: #{tpu_custom_call.1} parent=5 // pred_check
        %p643 = pneg %p642
      $region58: #{tpu_custom_call.1} parent=5 // pred_check_branch
        %645 = sbr.rel (%p643) target = $region60
      $region59: #{tpu_custom_call.1} parent=5 // pred_region
        %s646 = ssub.s32 %s19, 2
        // Predicated region
        $region61: #{tpu_custom_call.1} parent=59 // pred_check
          %p647 = pneg %p186
        $region62: #{tpu_custom_call.1} parent=59 // pred_check_branch
          %649 = sbr.rel (%p647) target = $region64
        $region63: #{tpu_custom_call.1} parent=59 // pred_region
          %s650 = sand.u32 %s171, 1
          %s651 = scalar_lea.sflag [#allocation5], %s650
          %s652 = sand.u32 %s171, 1
          %s653 = smul.addr %s652, 2
          %s654 = scalar_lea.vmem [#allocation8], %s653
          %655 = dma.done %s651, 32
        $region64: #{tpu_custom_call.1} parent=59 // pred_fallthru
          _
      $region60: #{tpu_custom_call.1} parent=5 // pred_fallthru
        _
    $region6: #{tpu_custom_call.1} parent=1 // loop_footer
      %s23 = sadd.s32 1, %s19
    $region7: #{tpu_custom_call.1} parent=1 // loop_footer_branch
      %18 = sbr.rel target = $region3
    $region8: #{tpu_custom_call.1} parent=1 // loop_exit
      _
    %656 = vsyncpa [#allocation4], 1
    %s657 = scalar_lea.sflag [#allocation4], 1
    %658 = vsyncpa %s657, 1
    %659 = vsyncpa [#allocation7], 1
    %660 = vsyncpa [#allocation5], 1
    %s661 = scalar_lea.sflag [#allocation5], 1
    %662 = vsyncpa %s661, 1

</llo_original>
